<compile_context>
chip_gen: v6e
topology: v6e:2x2x1
jax: 0.10.0
libtpu: 0.0.40
codegen_flags: <defaults>
</compile_context>

<pallas_src>
import functools

import jax
import jax.numpy as jnp
from jax.experimental import pallas as pl
from jax.experimental.pallas import tpu as pltpu

_NUM_CORES = 2  # leading "parallel" grid axis: megacore split on v7x,
                # a plain sequential loop of length 2 on v5e/v6e.


def _round_up(x, m):
    return ((x + m - 1) // m) * m


def _cdiv(a, b):
    return -(-a // b)


def _choose_row_tile(m_rows, width, itemsize,
                     target_block_bytes=2 * 1024 * 1024, max_rows=16384):
    """Sublane-aligned row tile of ~target_block_bytes per input block, capped
    so each of the _NUM_CORES grid slices gets at least one tile of work.

    VMEM model: 2 inputs x 2 pipeline buffers x (rows * width * itemsize)
    + resident (W,W)/(4,W) accumulators ~= 8.5 MiB at the 2 MiB target --
    inside the scoped-VMEM defaults on v5e (16 MiB) and far under v7x's
    32 MiB scoped / 64 MiB physical.
    """
    t = max(8, target_block_bytes // (width * itemsize))
    t = (min(t, max_rows) // 8) * 8
    per_core = _round_up(_cdiv(m_rows, _NUM_CORES), 8)
    t = min(t, per_core)
    if t >= m_rows:
        return m_rows          # single full-extent block (always legal)
    return max(t, 8)


def _bt_partial_kernel(h1_ref, h2_ref, off1_ref, off2_ref, g_ref, mom_ref, *,
                       tiles_per_core, tile_rows, m_rows, needs_mask):
    """Accumulate per-core partial moments of the offset-shifted embeddings.

    g_ref   : (W, W)  raw cross-moment  sum_n h1s[n,:]^T h2s[n,:]   (MXU)
    mom_ref : (4, W)  [sum h1s, sum h2s, sum h1s^2, sum h2s^2]      (VPU)
    """
    i = pl.program_id(1)

    @pl.when(i == 0)
    def _init():
        g_ref[...] = jnp.zeros_like(g_ref)
        mom_ref[...] = jnp.zeros_like(mom_ref)

    # Blocks are DMA'd at the input dtype (bf16 inputs halve HBM traffic);
    # arithmetic runs in f32.  The per-column offset makes the single-pass
    # moments robust to large column means (shift-invariant math).
    h1 = h1_ref[...].astype(jnp.float32) - off1_ref[...]
    h2 = h2_ref[...].astype(jnp.float32) - off2_ref[...]

    if needs_mask:
        # Tail rows of the last tile (and whole tiles past the end on the
        # padded core split) contribute exact zeros.
        c = pl.program_id(0)
        tile_idx = c * tiles_per_core + i
        row = tile_idx * tile_rows + jax.lax.broadcasted_iota(
            jnp.int32, h1.shape, 0)
        valid = row < m_rows
        h1 = jnp.where(valid, h1, 0.0)
        h2 = jnp.where(valid, h2, 0.0)

    g_ref[...] += jax.lax.dot_general(
        h1, h2, (((0,), (0,)), ((), ())),
        preferred_element_type=jnp.float32)
    mom_ref[...] += jnp.concatenate(
        [jnp.sum(h1, axis=0, keepdims=True),
         jnp.sum(h2, axis=0, keepdims=True),
         jnp.sum(h1 * h1, axis=0, keepdims=True),
         jnp.sum(h2 * h2, axis=0, keepdims=True)], axis=0)


@functools.partial(jax.jit, static_argnums=(2,))
def _within_embed_contrast_impl(h1, h2, eps):
    n, d = h1.shape

    # --- lane-dense layout: (N, D) -> (N/L, D*L), free metadata reshape ---
    if d < 128 and 128 % d == 0 and n % (128 // d) == 0:
        lane_group = 128 // d
    else:
        lane_group = 1          # already lane-dense (or awkward D / N)
    m_rows = n // lane_group
    w = d * lane_group
    h1r = h1.reshape(m_rows, w)
    h2r = h2.reshape(m_rows, w)

    # Per-column offsets (first row, replicated across lane groups) for the
    # shift-invariant single-pass moments.
    off1 = jnp.tile(h1[0:1, :].astype(jnp.float32), (1, lane_group))
    off2 = jnp.tile(h2[0:1, :].astype(jnp.float32), (1, lane_group))

    tile_rows = _choose_row_tile(m_rows, w, jnp.dtype(h1.dtype).itemsize)
    tiles_total = _cdiv(m_rows, tile_rows)
    tiles_per_core = _cdiv(tiles_total, _NUM_CORES)
    needs_clamp = tiles_per_core * _NUM_CORES != tiles_total
    needs_mask = needs_clamp or (m_rows % tile_rows != 0)

    if needs_clamp:
        # Never request a block starting past the array; the duplicated
        # (clamped) tile is fully masked out inside the kernel.
        def row_map(c, i):
            return (jnp.minimum(c * tiles_per_core + i, tiles_total - 1), 0)
    else:
        def row_map(c, i):
            return (c * tiles_per_core + i, 0)

    kernel = functools.partial(
        _bt_partial_kernel,
        tiles_per_core=tiles_per_core, tile_rows=tile_rows,
        m_rows=m_rows, needs_mask=needs_mask)

    g_part, mom_part = pl.pallas_call(
        kernel,
        grid=(_NUM_CORES, tiles_per_core),
        in_specs=[
            pl.BlockSpec((tile_rows, w), row_map),
            pl.BlockSpec((tile_rows, w), row_map),
            pl.BlockSpec((1, w), lambda c, i: (0, 0)),
            pl.BlockSpec((1, w), lambda c, i: (0, 0)),
        ],
        out_specs=(
            pl.BlockSpec((None, w, w), lambda c, i: (c, 0, 0)),
            pl.BlockSpec((None, 4, w), lambda c, i: (c, 0, 0)),
        ),
        out_shape=(
            jax.ShapeDtypeStruct((_NUM_CORES, w, w), jnp.float32),
            jax.ShapeDtypeStruct((_NUM_CORES, 4, w), jnp.float32),
        ),
        compiler_params=pltpu.CompilerParams(
            dimension_semantics=("parallel", "arbitrary"),
            vmem_limit_bytes=32 * 1024 * 1024),
    )(h1r, h2r, off1, off2)

    # --- tiny O(D^2) epilogue in plain JAX (runs once, not in the hot loop) ---
    g_dense = jnp.sum(g_part, axis=0)       # (W, W): combine the 2 core partials
    mom = jnp.sum(mom_part, axis=0)         # (4, W)

    gb = g_dense.reshape(lane_group, d, lane_group, d)
    cross = sum(gb[a, :, a, :] for a in range(lane_group))   # fold -> (D, D)

    def fold(v):                            # (W,) -> (D,)
        return v.reshape(lane_group, d).sum(axis=0)

    s1, s2, q1, q2 = fold(mom[0]), fold(mom[1]), fold(mom[2]), fold(mom[3])

    nf = jnp.float32(n)
    centered = cross - jnp.outer(s1, s2) / nf            # shift-invariant
    var1 = jnp.maximum(q1 - s1 * s1 / nf, 0.0) / (nf - 1.0)
    var2 = jnp.maximum(q2 - s2 * s2 / nf, 0.0) / (nf - 1.0)
    inv1 = 1.0 / (jnp.sqrt(var1) + eps)     # eps added to std, as in torch ref
    inv2 = 1.0 / (jnp.sqrt(var2) + eps)
    c = centered * jnp.outer(inv1, inv2) / nf

    eye = jnp.eye(d, dtype=jnp.float32)
    loss = (jnp.sum(((1.0 - c) * eye) ** 2)
            + (1.0 / d) * jnp.sum((c * (1.0 - eye)) ** 2))
    # c(h2, h1) == c(h1, h2).T and the BT loss is transpose-invariant, so the
    # module's 0.5 * (loss(h1,h2) + loss(h2,h1)) equals the one-direction loss.
    return loss


def within_embed_contrast(h1, h2, labels=None, *, eps=1e-15):
    assert h1.shape == h2.shape and h1.ndim == 2
    # TODO(synk): labels branch (bincount class weights) not implemented; the
    # BT loss is a scalar and the normalized weights sum to 1, so the weighted
    # path is mathematically identical to labels=None.
    del labels
    return _within_embed_contrast_impl(h1, h2, float(eps))


def _reference(h1, h2, eps=1e-15):
    # Pure-JAX mirror of the PyTorch module (labels=None path, canonical BT).
    n, d = h1.shape

    def bn(z):
        mu = jnp.mean(z, axis=0, keepdims=True)
        std = jnp.sqrt(jnp.sum((z - mu) ** 2, axis=0, keepdims=True) / (n - 1))
        return (z - mu) / (std + eps)

    def bt(a, s):
        c = bn(a).T @ bn(s) / n
        eye = jnp.eye(d)
        return (jnp.sum(((1.0 - c) * eye) ** 2)
                + (1.0 / d) * jnp.sum((c * (1.0 - eye)) ** 2))

    return 0.5 * (bt(h1, h2) + bt(h2, h1))


if __name__ == "__main__":
    key = jax.random.PRNGKey(0)
    k1, k2, k3, k4 = jax.random.split(key, 4)

    # Primary case: lane-dense reshape (2048,32)->(512,128), two-core split,
    # no tail mask.
    N, D = 2048, 32
    h1 = jax.random.normal(k1, (N, D), dtype=jnp.float32)
    h2 = jax.random.normal(k2, (N, D), dtype=jnp.float32)
    loss = jax.block_until_ready(within_embed_contrast(h1, h2))
    ref = _reference(h1, h2)
    assert jnp.allclose(loss, ref, rtol=1e-3, atol=1e-3), (loss, ref)

    # Secondary case: awkward N and non-zero column means -> exercises the
    # masked-tail tile and the offset-shifted single-pass moments.
    N2 = 1000
    g1 = jax.random.normal(k3, (N2, D), dtype=jnp.float32) + 3.0
    g2 = jax.random.normal(k4, (N2, D), dtype=jnp.float32) + 3.0
    loss2 = jax.block_until_ready(within_embed_contrast(g1, g2))
    ref2 = _reference(g1, g2)
    assert jnp.allclose(loss2, ref2, rtol=1e-3, atol=1e-3), (loss2, ref2)

    print("KERNEL_OK")
</pallas_src>

<mosaic_0001>
module attributes {stable_mosaic.version = 11 : i64} {
  func.func @_bt_partial_kernel(%arg0: i32, %arg1: i32, %arg2: memref<256x128xf32, #tpu.memory_space<vmem>>, %arg3: memref<256x128xf32, #tpu.memory_space<vmem>>, %arg4: memref<1x128xf32, #tpu.memory_space<vmem>>, %arg5: memref<1x128xf32, #tpu.memory_space<vmem>>, %arg6: memref<1x128x128xf32, #tpu.memory_space<vmem>>, %arg7: memref<1x4x128xf32, #tpu.memory_space<vmem>>) attributes {dimension_semantics = [#tpu.dimension_semantics<parallel>, #tpu.dimension_semantics<arbitrary>], iteration_bounds = array<i64: 2, 1>, scalar_prefetch = 0 : i64, scratch_operands = 0 : i64, tpu.core_type = #tpu.core_type<tc>, window_params = [{transform_indices = @transform_0, window_bounds = array<i64: 256, 128>}, {transform_indices = @transform_1, window_bounds = array<i64: 256, 128>}, {pipeline_mode = #tpu.pipeline_mode<synchronous>, transform_indices = @transform_2, window_bounds = array<i64: 1, 128>}, {pipeline_mode = #tpu.pipeline_mode<synchronous>, transform_indices = @transform_3, window_bounds = array<i64: 1, 128>}, {transform_indices = @transform_4, window_bounds = array<i64: 1, 128, 128>}, {transform_indices = @transform_5, window_bounds = array<i64: 1, 4, 128>}]} {
    %c0_i32 = arith.constant 0 : i32
    %0 = arith.cmpi eq, %arg1, %c0_i32 : i32
    %1 = arith.extui %0 : i1 to i32
    %c0_i32_0 = arith.constant 0 : i32
    %2 = arith.cmpi ne, %1, %c0_i32_0 : i32
    scf.if %2 {
      %cst_24 = arith.constant 0.000000e+00 : f32
      %35 = vector.broadcast %cst_24 : f32 to vector<128x128xf32>
      %c0_25 = arith.constant 0 : index
      %c0_26 = arith.constant 0 : index
      %c0_27 = arith.constant 0 : index
      %36 = vector.load %arg6[%c0_25, %c0_26, %c0_27] : memref<1x128x128xf32, #tpu.memory_space<vmem>>, vector<1x128x128xf32>
      %37 = vector.shape_cast %36 : vector<1x128x128xf32> to vector<128x128xf32>
      %38 = vector.shape_cast %35 : vector<128x128xf32> to vector<1x128x128xf32>
      tpu.vector_store %arg6[%c0_25, %c0_26, %c0_27], %38 {strides = array<i32>} : memref<1x128x128xf32, #tpu.memory_space<vmem>>, vector<1x128x128xf32>,
      %cst_28 = arith.constant 0.000000e+00 : f32
      %39 = vector.broadcast %cst_28 : f32 to vector<4x128xf32>
      %c0_29 = arith.constant 0 : index
      %c0_30 = arith.constant 0 : index
      %c0_31 = arith.constant 0 : index
      %40 = vector.load %arg7[%c0_29, %c0_30, %c0_31] : memref<1x4x128xf32, #tpu.memory_space<vmem>>, vector<1x4x128xf32>
      %41 = vector.shape_cast %40 : vector<1x4x128xf32> to vector<4x128xf32>
      %42 = vector.shape_cast %39 : vector<4x128xf32> to vector<1x4x128xf32>
      tpu.vector_store %arg7[%c0_29, %c0_30, %c0_31], %42 {strides = array<i32>} : memref<1x4x128xf32, #tpu.memory_space<vmem>>, vector<1x4x128xf32>,
    } else {
    }
    %c0 = arith.constant 0 : index
    %c0_1 = arith.constant 0 : index
    %3 = vector.load %arg2[%c0, %c0_1] : memref<256x128xf32, #tpu.memory_space<vmem>>, vector<256x128xf32>
    %c0_2 = arith.constant 0 : index
    %c0_3 = arith.constant 0 : index
    %4 = vector.load %arg4[%c0_2, %c0_3] : memref<1x128xf32, #tpu.memory_space<vmem>>, vector<1x128xf32>
    %5 = vector.broadcast %4 : vector<1x128xf32> to vector<256x128xf32>
    %6 = arith.subf %3, %5 : vector<256x128xf32>
    %c0_4 = arith.constant 0 : index
    %c0_5 = arith.constant 0 : index
    %7 = vector.load %arg3[%c0_4, %c0_5] : memref<256x128xf32, #tpu.memory_space<vmem>>, vector<256x128xf32>
    %c0_6 = arith.constant 0 : index
    %c0_7 = arith.constant 0 : index
    %8 = vector.load %arg5[%c0_6, %c0_7] : memref<1x128xf32, #tpu.memory_space<vmem>>, vector<1x128xf32>
    %9 = vector.broadcast %8 : vector<1x128xf32> to vector<256x128xf32>
    %10 = arith.subf %7, %9 : vector<256x128xf32>
    %c0_8 = arith.constant 0 : index
    %c0_9 = arith.constant 0 : index
    %c0_10 = arith.constant 0 : index
    %11 = vector.load %arg6[%c0_8, %c0_9, %c0_10] : memref<1x128x128xf32, #tpu.memory_space<vmem>>, vector<1x128x128xf32>
    %12 = vector.shape_cast %11 : vector<1x128x128xf32> to vector<128x128xf32>
    %cst = arith.constant dense<0.000000e+00> : vector<128x128xf32>
    %13 = tpu.matmul %6, %10, %cst {dimension_numbers = #tpu.dot_dimension_numbers<[0], [0], [1], [1], [0, 1, 1, 1], [], []>} : vector<256x128xf32>, vector<256x128xf32>, vector<128x128xf32> -> vector<128x128xf32>
    %14 = arith.addf %12, %13 : vector<128x128xf32>
    %c0_11 = arith.constant 0 : index
    %c0_12 = arith.constant 0 : index
    %c0_13 = arith.constant 0 : index
    %15 = vector.load %arg6[%c0_11, %c0_12, %c0_13] : memref<1x128x128xf32, #tpu.memory_space<vmem>>, vector<1x128x128xf32>
    %16 = vector.shape_cast %15 : vector<1x128x128xf32> to vector<128x128xf32>
    %17 = vector.shape_cast %14 : vector<128x128xf32> to vector<1x128x128xf32>
    tpu.vector_store %arg6[%c0_11, %c0_12, %c0_13], %17 {strides = array<i32>} : memref<1x128x128xf32, #tpu.memory_space<vmem>>, vector<1x128x128xf32>,
    %c0_14 = arith.constant 0 : index
    %c0_15 = arith.constant 0 : index
    %c0_16 = arith.constant 0 : index
    %18 = vector.load %arg7[%c0_14, %c0_15, %c0_16] : memref<1x4x128xf32, #tpu.memory_space<vmem>>, vector<1x4x128xf32>
    %19 = vector.shape_cast %18 : vector<1x4x128xf32> to vector<4x128xf32>
    %cst_17 = arith.constant dense<0.000000e+00> : vector<128xf32>
    %20 = vector.multi_reduction <add>, %6, %cst_17 [0] : vector<256x128xf32> to vector<128xf32>
    %21 = vector.shape_cast %20 : vector<128xf32> to vector<1x128xf32>
    %cst_18 = arith.constant dense<0.000000e+00> : vector<128xf32>
    %22 = vector.multi_reduction <add>, %10, %cst_18 [0] : vector<256x128xf32> to vector<128xf32>
    %23 = vector.shape_cast %22 : vector<128xf32> to vector<1x128xf32>
    %24 = arith.mulf %6, %6 : vector<256x128xf32>
    %cst_19 = arith.constant dense<0.000000e+00> : vector<128xf32>
    %25 = vector.multi_reduction <add>, %24, %cst_19 [0] : vector<256x128xf32> to vector<128xf32>
    %26 = vector.shape_cast %25 : vector<128xf32> to vector<1x128xf32>
    %27 = arith.mulf %10, %10 : vector<256x128xf32>
    %cst_20 = arith.constant dense<0.000000e+00> : vector<128xf32>
    %28 = vector.multi_reduction <add>, %27, %cst_20 [0] : vector<256x128xf32> to vector<128xf32>
    %29 = vector.shape_cast %28 : vector<128xf32> to vector<1x128xf32>
    %30 = tpu.concatenate %21, %23, %26, %29 in 0 : vector<1x128xf32>, vector<1x128xf32>, vector<1x128xf32>, vector<1x128xf32> -> vector<4x128xf32>
    %31 = arith.addf %19, %30 : vector<4x128xf32>
    %c0_21 = arith.constant 0 : index
    %c0_22 = arith.constant 0 : index
    %c0_23 = arith.constant 0 : index
    %32 = vector.load %arg7[%c0_21, %c0_22, %c0_23] : memref<1x4x128xf32, #tpu.memory_space<vmem>>, vector<1x4x128xf32>
    %33 = vector.shape_cast %32 : vector<1x4x128xf32> to vector<4x128xf32>
    %34 = vector.shape_cast %31 : vector<4x128xf32> to vector<1x4x128xf32>
    tpu.vector_store %arg7[%c0_21, %c0_22, %c0_23], %34 {strides = array<i32>} : memref<1x4x128xf32, #tpu.memory_space<vmem>>, vector<1x4x128xf32>,
    return
  }
  func.func @transform_0(%arg0: i32, %arg1: i32) -> (i32, i32) {
    %c1_i32 = arith.constant 1 : i32
    %0 = arith.muli %arg0, %c1_i32 : i32
    %1 = arith.addi %0, %arg1 : i32
    %c0_i32 = arith.constant 0 : i32
    %c0_i32_0 = arith.constant 0 : i32
    return %1, %c0_i32 : i32, i32
  }
  func.func @transform_1(%arg0: i32, %arg1: i32) -> (i32, i32) {
    %c1_i32 = arith.constant 1 : i32
    %0 = arith.muli %arg0, %c1_i32 : i32
    %1 = arith.addi %0, %arg1 : i32
    %c0_i32 = arith.constant 0 : i32
    %c0_i32_0 = arith.constant 0 : i32
    return %1, %c0_i32 : i32, i32
  }
  func.func @transform_2(%arg0: i32, %arg1: i32) -> (i32, i32) {
    %c0_i32 = arith.constant 0 : i32
    %c0_i32_0 = arith.constant 0 : i32
    %c0_i32_1 = arith.constant 0 : i32
    return %c0_i32, %c0_i32_0 : i32, i32
  }
  func.func @transform_3(%arg0: i32, %arg1: i32) -> (i32, i32) {
    %c0_i32 = arith.constant 0 : i32
    %c0_i32_0 = arith.constant 0 : i32
    %c0_i32_1 = arith.constant 0 : i32
    return %c0_i32, %c0_i32_0 : i32, i32
  }
  func.func @transform_4(%arg0: i32, %arg1: i32) -> (i32, i32, i32) {
    %c0_i32 = arith.constant 0 : i32
    %c0_i32_0 = arith.constant 0 : i32
    %c0_i32_1 = arith.constant 0 : i32
    return %arg0, %c0_i32, %c0_i32_0 : i32, i32, i32
  }
  func.func @transform_5(%arg0: i32, %arg1: i32) -> (i32, i32, i32) {
    %c0_i32 = arith.constant 0 : i32
    %c0_i32_0 = arith.constant 0 : i32
    %c0_i32_1 = arith.constant 0 : i32
    return %arg0, %c0_i32, %c0_i32_0 : i32, i32, i32
  }
}

</mosaic_0001>

<llo_original>
// kernel: squeeze.12
$region0: #{squeeze.12}
  %s0 = inlined_call_operand.vmem [shape: f32[128], index: 0, kind: input, shape index: {}]
  %s1 = inlined_call_operand.vmem [shape: f32[4,32], index: 1, kind: output, shape index: {}]
  $region1: #{squeeze.12} parent=0
    #allocation0 [shape = 'u8[4096]{0}', space=vmem, size = 0x1000, scoped, tag = 'scoped mem for output reshape']
    #allocation1 [shape = 'u8[4096]{0}', space=vmem, size = 0x1000, scoped, tag = 'scoped mem for input reshape']
    %s3 = sshll.u32 1, 1
    %s4 = ssub.s32 %s3, 1
    %v5 = vld [vmem:[%s0] sm:%s4]
    %6 = vst [vmem:[#allocation1] sm:%s4] %v5
    %v7 = vld [vmem:[#allocation1] sm:$0x1]
    %vm8 = vcmask 261120
    %9 = vst.msk [vmem:[#allocation0] sm:$0x1] %vm8, %v7
    %v10 = vld [vmem:[#allocation1] sm:$0x1]
    %11 = vrot.lane.b32.xlu0 %v10, 96
    %v12 = vpop.permute.xlu0 %11
    %vm13 = vcmask 261120
    %s14 = scalar_lea.vmem [#allocation0], 1
    %15 = vst.msk [vmem:[%s14] sm:$0x1] %vm13, %v12
    %v16 = vld [vmem:[#allocation1] sm:$0x1]
    %17 = vrot.lane.b32.xlu0 %v16, 64
    %v18 = vpop.permute.xlu0 %17
    %vm19 = vcmask 261120
    %s20 = scalar_lea.vmem [#allocation0], 2
    %21 = vst.msk [vmem:[%s20] sm:$0x1] %vm19, %v18
    %v22 = vld [vmem:[#allocation1] sm:$0x1]
    %23 = vrot.lane.b32.xlu0 %v22, 32
    %v24 = vpop.permute.xlu0 %23
    %vm25 = vcmask 261120
    %s26 = scalar_lea.vmem [#allocation0], 3
    %27 = vst.msk [vmem:[%s26] sm:$0x1] %vm25, %v24
    %s29 = sshll.u32 1, 4
    %s30 = ssub.s32 %s29, 1
    %v32 = vld [vmem:[#allocation0] sm:%s30]
    %s33 = sshll.u32 1, 4
    %s34 = ssub.s32 %s33, 1
    %35 = vst [vmem:[%s1] sm:%s34] %v32

// kernel: _within_embed_contrast_impl.1
$region0: #{_within_embed_contrast_impl.1}
  #allocation0 [shape = 'u32[]', space=smem, size = 0x4, offset = 0x4, fixed_abs, tag = 'smem constant byte address 0x4 - core index']
  #allocation1 [shape = 'u32[144,128]{1,0:T(1,128)}', space=vmem, size = 0x12000, scoped, tag = 'internal scratch']
  %s0 = inlined_call_operand.vmem [shape: f32[512,128], index: 0, kind: input, shape index: {}]
  %s1 = inlined_call_operand.vmem [shape: f32[512,128], index: 1, kind: input, shape index: {}]
  %s2 = inlined_call_operand.vmem [shape: f32[1,128], index: 2, kind: input, shape index: {}]
  %s3 = inlined_call_operand.vmem [shape: f32[1,128], index: 3, kind: input, shape index: {}]
  %s4 = inlined_call_operand.vmem [shape: f32[2,128,128], index: 4, kind: output, shape index: {0}]
  %s5 = inlined_call_operand.vmem [shape: f32[2,4,128], index: 5, kind: output, shape index: {1}]
  %6 = xla_tuple %s4, %s5
  %s7 = sld [smem:[#allocation0]]
  $region61: #{_within_embed_contrast_impl.1} parent=0
    _
  %s9 = ssub.s32 1, %s7
  %s10 = scalar_select 0, %s9, %s7
  loop: start=0, step=1, limit=4
  $region2: #{_within_embed_contrast_impl.1} parent=0 // loop_pre_header
    _
  $region3: #{_within_embed_contrast_impl.1} parent=0 // loop_header
    %s12 = sphi 0, %s16
    %p13 = scmp.ge.s32.totalorder %s12, 4
    %s19 = sphi 0, %s31
    %s20 = sphi 0, %s27
    %s21 = sphi 0, %s19
    %s22 = sphi 0, %s20
    %s23 = sphi 0, %s21
    %s24 = sphi 0, %s22
    %s36 = sphi 0, %s38
    %s39 = sphi 0, %s36
    %s40 = sphi 0, %s39
    %s56 = sphi 0, %s40
    %s64 = sphi 0, %s66
    %s67 = sphi 0, %s64
    %s68 = sphi 0, %s67
    %s84 = sphi 0, %s68
    %s88 = sphi 0, %s88
    %s90 = sphi 0, %s88
    %s91 = sphi 0, %s90
    %s105 = sphi 0, %s91
    %s109 = sphi 0, %s109
    %s111 = sphi 0, %s109
    %s112 = sphi 0, %s111
    %s126 = sphi 0, %s112
    %s132 = sphi 0, %s134
    %s135 = sphi 0, %s132
    %s136 = sphi 0, %s135
    %s152 = sphi 0, %s136
    %s158 = sphi 0, %s160
    %s161 = sphi 0, %s158
    %s162 = sphi 0, %s161
    %s178 = sphi 0, %s162
  $region4: #{_within_embed_contrast_impl.1} parent=0 // loop_header_branch
    %15 = sbr.rel (%p13) target = $region8
  $region5: #{_within_embed_contrast_impl.1} parent=0 // loop_body
    %s17 = ssub.s32 %s12, 1
    %s18 = ssub.s32 %s12, 2
    %s25 = sadd.s32 1, %s20
    %p26 = scmp.ge.s32.totalorder %s25, 1
    %s27 = scalar_select %p26, 0, %s25
    %s28 = sadd.s32 1, %s19
    %s29 = scalar_select %p26, %s28, %s19
    %p30 = scmp.ge.s32.totalorder %s29, 2
    %s31 = scalar_select %p30, 0, %s29
    %s32 = sadd.s32 %s19, %s20
    %s33 = sadd.s32 %s31, %s27
    %s34 = ssub.s32 %s32, %s33
    %p35 = scmp.eq.s32.totalorder %s34, 0
    %s37 = sadd.s32 %s36, 1
    %s38 = scalar_select %p35, %s36, %s37
    %p41 = pneg %p35
    %p42 = scmp.eq.s32.totalorder %s12, 1
    %p43 = por %p41, %p42
    %p44 = scmp.ne.s32.totalorder %s36, %s39
    %p45 = scmp.eq.s32.totalorder %s12, 0
    %p46 = por %p44, %p45
    %p47 = scmp.ne.s32.totalorder %s36, %s39
    %p48 = scmp.eq.s32.totalorder %s17, 1
    %p49 = por %p47, %p48
    %p50 = scmp.ne.s32.totalorder %s39, %s40
    %p51 = scmp.eq.s32.totalorder %s17, 0
    %p52 = por %p50, %p51
    %p53 = scmp.ne.s32.totalorder %s39, %s40
    %p54 = scmp.eq.s32.totalorder %s18, 1
    %p55 = por %p53, %p54
    %p57 = scmp.ne.s32.totalorder %s40, %s56
    %p58 = scmp.eq.s32.totalorder %s18, 0
    %p59 = por %p57, %p58
    %s60 = sadd.s32 %s19, %s20
    %s61 = sadd.s32 %s31, %s27
    %s62 = ssub.s32 %s60, %s61
    %p63 = scmp.eq.s32.totalorder %s62, 0
    %s65 = sadd.s32 %s64, 1
    %s66 = scalar_select %p63, %s64, %s65
    %p69 = pneg %p63
    %p70 = scmp.eq.s32.totalorder %s12, 1
    %p71 = por %p69, %p70
    %p72 = scmp.ne.s32.totalorder %s64, %s67
    %p73 = scmp.eq.s32.totalorder %s12, 0
    %p74 = por %p72, %p73
    %p75 = scmp.ne.s32.totalorder %s64, %s67
    %p76 = scmp.eq.s32.totalorder %s17, 1
    %p77 = por %p75, %p76
    %p78 = scmp.ne.s32.totalorder %s67, %s68
    %p79 = scmp.eq.s32.totalorder %s17, 0
    %p80 = por %p78, %p79
    %p81 = scmp.ne.s32.totalorder %s67, %s68
    %p82 = scmp.eq.s32.totalorder %s18, 1
    %p83 = por %p81, %p82
    %p85 = scmp.ne.s32.totalorder %s68, %s84
    %p86 = scmp.eq.s32.totalorder %s18, 0
    %p87 = por %p85, %p86
    %s89 = sadd.s32 %s88, 1
    %p92 = scmp.eq.s32.totalorder %s12, 1
    %p93 = scmp.ne.s32.totalorder %s88, %s90
    %p94 = scmp.eq.s32.totalorder %s12, 0
    %p95 = por %p93, %p94
    %p96 = scmp.ne.s32.totalorder %s88, %s90
    %p97 = scmp.eq.s32.totalorder %s17, 1
    %p98 = por %p96, %p97
    %p99 = scmp.ne.s32.totalorder %s90, %s91
    %p100 = scmp.eq.s32.totalorder %s17, 0
    %p101 = por %p99, %p100
    %p102 = scmp.ne.s32.totalorder %s90, %s91
    %p103 = scmp.eq.s32.totalorder %s18, 1
    %p104 = por %p102, %p103
    %p106 = scmp.ne.s32.totalorder %s91, %s105
    %p107 = scmp.eq.s32.totalorder %s18, 0
    %p108 = por %p106, %p107
    %s110 = sadd.s32 %s109, 1
    %p113 = scmp.eq.s32.totalorder %s12, 1
    %p114 = scmp.ne.s32.totalorder %s109, %s111
    %p115 = scmp.eq.s32.totalorder %s12, 0
    %p116 = por %p114, %p115
    %p117 = scmp.ne.s32.totalorder %s109, %s111
    %p118 = scmp.eq.s32.totalorder %s17, 1
    %p119 = por %p117, %p118
    %p120 = scmp.ne.s32.totalorder %s111, %s112
    %p121 = scmp.eq.s32.totalorder %s17, 0
    %p122 = por %p120, %p121
    %p123 = scmp.ne.s32.totalorder %s111, %s112
    %p124 = scmp.eq.s32.totalorder %s18, 1
    %p125 = por %p123, %p124
    %p127 = scmp.ne.s32.totalorder %s112, %s126
    %p128 = scmp.eq.s32.totalorder %s18, 0
    %p129 = por %p127, %p128
    %s130 = ssub.s32 %s19, %s31
    %p131 = scmp.eq.s32.totalorder %s130, 0
    %s133 = sadd.s32 %s132, 1
    %s134 = scalar_select %p131, %s132, %s133
    %p137 = pneg %p131
    %p138 = scmp.eq.s32.totalorder %s12, 1
    %p139 = por %p137, %p138
    %p140 = scmp.ne.s32.totalorder %s132, %s135
    %p141 = scmp.eq.s32.totalorder %s12, 0
    %p142 = por %p140, %p141
    %p143 = scmp.ne.s32.totalorder %s132, %s135
    %p144 = scmp.eq.s32.totalorder %s17, 1
    %p145 = por %p143, %p144
    %p146 = scmp.ne.s32.totalorder %s135, %s136
    %p147 = scmp.eq.s32.totalorder %s17, 0
    %p148 = por %p146, %p147
    %p149 = scmp.ne.s32.totalorder %s135, %s136
    %p150 = scmp.eq.s32.totalorder %s18, 1
    %p151 = por %p149, %p150
    %p153 = scmp.ne.s32.totalorder %s136, %s152
    %p154 = scmp.eq.s32.totalorder %s18, 0
    %p155 = por %p153, %p154
    %s156 = ssub.s32 %s19, %s31
    %p157 = scmp.eq.s32.totalorder %s156, 0
    %s159 = sadd.s32 %s158, 1
    %s160 = scalar_select %p157, %s158, %s159
    %p163 = pneg %p157
    %p164 = scmp.eq.s32.totalorder %s12, 1
    %p165 = por %p163, %p164
    %p166 = scmp.ne.s32.totalorder %s158, %s161
    %p167 = scmp.eq.s32.totalorder %s12, 0
    %p168 = por %p166, %p167
    %p169 = scmp.ne.s32.totalorder %s158, %s161
    %p170 = scmp.eq.s32.totalorder %s17, 1
    %p171 = por %p169, %p170
    %p172 = scmp.ne.s32.totalorder %s161, %s162
    %p173 = scmp.eq.s32.totalorder %s17, 0
    %p174 = por %p172, %p173
    %p175 = scmp.ne.s32.totalorder %s161, %s162
    %p176 = scmp.eq.s32.totalorder %s18, 1
    %p177 = por %p175, %p176
    %p179 = scmp.ne.s32.totalorder %s162, %s178
    %p180 = scmp.eq.s32.totalorder %s18, 0
    %p181 = por %p179, %p180
    %p182 = scmp.le.s32.totalorder 1, %s12
    %p183 = scmp.lt.s32.totalorder %s12, 3
    %p184 = pnand %p182, %p183
    %p185 = pneg %p184
    // Predicated region
    $region9: #{_within_embed_contrast_impl.1} parent=5 // pred_check
      _
    $region10: #{_within_embed_contrast_impl.1} parent=5 // pred_check_branch
      %187 = sbr.rel (%p184) target = $region12
    $region11: #{_within_embed_contrast_impl.1} parent=5 // pred_region
      %s188 = ssub.s32 %s12, 1
      // Predicated region
      $region13: #{_within_embed_contrast_impl.1} parent=11 // pred_check
        %p189 = pneg %p101
      $region14: #{_within_embed_contrast_impl.1} parent=11 // pred_check_branch
        %191 = sbr.rel (%p189) target = $region16
      $region15: #{_within_embed_contrast_impl.1} parent=11 // pred_region
        _
      $region16: #{_within_embed_contrast_impl.1} parent=11 // pred_fallthru
        _
      // Predicated region
      $region17: #{_within_embed_contrast_impl.1} parent=11 // pred_check
        %p192 = pneg %p122
      $region18: #{_within_embed_contrast_impl.1} parent=11 // pred_check_branch
        %194 = sbr.rel (%p192) target = $region20
      $region19: #{_within_embed_contrast_impl.1} parent=11 // pred_region
        _
      $region20: #{_within_embed_contrast_impl.1} parent=11 // pred_fallthru
        _
    $region12: #{_within_embed_contrast_impl.1} parent=5 // pred_fallthru
      _
    %p195 = scmp.lt.s32.totalorder %s12, 2
    // Predicated region
    $region21: #{_within_embed_contrast_impl.1} parent=5 // pred_check
      %p196 = pneg %p195
    $region22: #{_within_embed_contrast_impl.1} parent=5 // pred_check_branch
      %198 = sbr.rel (%p196) target = $region24
    $region23: #{_within_embed_contrast_impl.1} parent=5 // pred_region
      // Predicated region
      $region25: #{_within_embed_contrast_impl.1} parent=23 // pred_check
        %p199 = pneg %p46
      $region26: #{_within_embed_contrast_impl.1} parent=23 // pred_check_branch
        %201 = sbr.rel (%p199) target = $region28
      $region27: #{_within_embed_contrast_impl.1} parent=23 // pred_region
        %s202 = sadd.s32 %s19, %s20
        %s203 = smul.u32 32, %s202
        %p204 = scmp.lt.s32.totalorder %s203, 63
        %s205 = scalar_select %p204, %s203, 63
        %s206 = smul.addr %s205, 8
        %s207 = scalar_lea.vmem %s0, %s206
        %s208 = sadd.s32 %s19, %s20
        %s209 = smul.u32 32, %s208
      $region28: #{_within_embed_contrast_impl.1} parent=23 // pred_fallthru
        _
      // Predicated region
      $region29: #{_within_embed_contrast_impl.1} parent=23 // pred_check
        %p210 = pneg %p74
      $region30: #{_within_embed_contrast_impl.1} parent=23 // pred_check_branch
        %212 = sbr.rel (%p210) target = $region32
      $region31: #{_within_embed_contrast_impl.1} parent=23 // pred_region
        %s213 = sadd.s32 %s19, %s20
        %s214 = smul.u32 32, %s213
        %p215 = scmp.lt.s32.totalorder %s214, 63
        %s216 = scalar_select %p215, %s214, 63
        %s217 = smul.addr %s216, 8
        %s218 = scalar_lea.vmem %s1, %s217
        %s219 = sadd.s32 %s19, %s20
        %s220 = smul.u32 32, %s219
      $region32: #{_within_embed_contrast_impl.1} parent=23 // pred_fallthru
        _
    $region24: #{_within_embed_contrast_impl.1} parent=5 // pred_fallthru
      _
    %p221 = scmp.le.s32.totalorder 1, %s12
    %p222 = scmp.lt.s32.totalorder %s12, 3
    %p223 = pnand %p221, %p222
    %p224 = pneg %p223
    // Predicated region
    $region33: #{_within_embed_contrast_impl.1} parent=5 // pred_check
      _
    $region34: #{_within_embed_contrast_impl.1} parent=5 // pred_check_branch
      %226 = sbr.rel (%p223) target = $region36
    $region35: #{_within_embed_contrast_impl.1} parent=5 // pred_region
      %s227 = ssub.s32 %s12, 1
      %s228 = sadd.s32 %s21, %s22
      %s229 = smul.u32 32, %s228
      %p230 = scmp.lt.s32.totalorder %s229, 63
      %s231 = scalar_select %p230, %s229, 63
      %s232 = smul.addr %s231, 8
      %s233 = scalar_lea.vmem %s0, %s232
      %p234 = pneg %p52
      %p235 = pneg %p49
      %s236 = sadd.s32 %s21, %s22
      %s237 = smul.u32 32, %s236
      %p238 = scmp.lt.s32.totalorder %s237, 63
      %s239 = scalar_select %p238, %s237, 63
      %s240 = smul.addr %s239, 8
      %s241 = scalar_lea.vmem %s1, %s240
      %p242 = pneg %p80
      %p243 = pneg %p77
      %p244 = pneg %p101
      %p245 = pneg %p98
      %p246 = pneg %p122
      %p247 = pneg %p119
      %p248 = pneg %p148
      %p249 = pneg %p145
      %p250 = scmp.lt.s32.totalorder %s21, 1
      %s251 = scalar_select %p250, %s21, 1
      %s252 = smul.addr %s251, 16
      %s253 = smul.addr %s252, 8
      %s254 = scalar_lea.vmem %s4, %s253
      %p255 = pneg %p174
      %p256 = pneg %p171
      %p257 = scmp.lt.s32.totalorder %s21, 1
      %s258 = scalar_select %p257, %s21, 1
      %s259 = smul.addr %s258, 4
      %s260 = scalar_lea.vmem %s5, %s259
      %s261 = sadd.s32 %s21, %s22
      %s262 = smul.u32 32, %s261
      %p263 = scmp.lt.s32.totalorder %s262, 63
      %s264 = scalar_select %p263, %s262, 63
      %s265 = smul.addr %s264, 8
      %s266 = scalar_lea.vmem %s0, %s265
      %s267 = sadd.s32 %s21, %s22
      %s268 = smul.u32 32, %s267
      %s269 = sadd.s32 %s21, %s22
      %s270 = smul.u32 32, %s269
      %p271 = scmp.lt.s32.totalorder %s270, 63
      %s272 = scalar_select %p271, %s270, 63
      %s273 = smul.addr %s272, 8
      %s274 = scalar_lea.vmem %s1, %s273
      %s275 = sadd.s32 %s21, %s22
      %s276 = smul.u32 32, %s275
      %p277 = scmp.lt.s32.totalorder %s21, 1
      %s278 = scalar_select %p277, %s21, 1
      %s279 = smul.addr %s278, 16
      %s280 = smul.addr %s279, 8
      %s281 = scalar_lea.vmem %s4, %s280
      %p282 = scmp.lt.s32.totalorder %s21, 1
      %s283 = scalar_select %p282, %s21, 1
      %s284 = smul.addr %s283, 4
      %s285 = scalar_lea.vmem %s5, %s284
      %p286 = scmp.eq.s32.totalorder %s22, 0
      // Predicated region
      $region37: #{_within_embed_contrast_impl.1} parent=35 // pred_check
        %p287 = pneg %p286
      $region38: #{_within_embed_contrast_impl.1} parent=35 // pred_check_branch
        %289 = sbr.rel (%p287) target = $region40
      $region39: #{_within_embed_contrast_impl.1} parent=35 // pred_region
        %290 = vst [vmem:[%s281] sm:$0xff] 0.0
        %291 = vst [vmem:[%s281 + $0x8] sm:$0xff] 0.0
        %292 = vst [vmem:[%s281 + $0x10] sm:$0xff] 0.0
        %293 = vst [vmem:[%s281 + $0x18] sm:$0xff] 0.0
        %294 = vst [vmem:[%s281 + $0x20] sm:$0xff] 0.0
        %295 = vst [vmem:[%s281 + $0x28] sm:$0xff] 0.0
        %296 = vst [vmem:[%s281 + $0x30] sm:$0xff] 0.0
        %297 = vst [vmem:[%s281 + $0x38] sm:$0xff] 0.0
        %298 = vst [vmem:[%s281 + $0x40] sm:$0xff] 0.0
        %299 = vst [vmem:[%s281 + $0x48] sm:$0xff] 0.0
        %300 = vst [vmem:[%s281 + $0x50] sm:$0xff] 0.0
        %301 = vst [vmem:[%s281 + $0x58] sm:$0xff] 0.0
        %302 = vst [vmem:[%s281 + $0x60] sm:$0xff] 0.0
        %303 = vst [vmem:[%s281 + $0x68] sm:$0xff] 0.0
        %304 = vst [vmem:[%s281 + $0x70] sm:$0xff] 0.0
        %305 = vst [vmem:[%s281 + $0x78] sm:$0xff] 0.0
        %306 = vst [vmem:[%s285] sm:$0xf] 0.0
      $region40: #{_within_embed_contrast_impl.1} parent=35 // pred_fallthru
        _
      %v307 = vld [vmem:[%s266] sm:$0xff]
      %v308 = vld [vmem:[%s266 + $0x8] sm:$0xff]
      %v309 = vld [vmem:[%s266 + $0x10] sm:$0xff]
      %v310 = vld [vmem:[%s266 + $0x18] sm:$0xff]
      %v311 = vld [vmem:[%s266 + $0x20] sm:$0xff]
      %v312 = vld [vmem:[%s266 + $0x28] sm:$0xff]
      %v313 = vld [vmem:[%s266 + $0x30] sm:$0xff]
      %v314 = vld [vmem:[%s266 + $0x38] sm:$0xff]
      %v315 = vld [vmem:[%s266 + $0x40] sm:$0xff]
      %v316 = vld [vmem:[%s266 + $0x48] sm:$0xff]
      %v317 = vld [vmem:[%s266 + $0x50] sm:$0xff]
      %v318 = vld [vmem:[%s266 + $0x58] sm:$0xff]
      %v319 = vld [vmem:[%s266 + $0x60] sm:$0xff]
      %v320 = vld [vmem:[%s266 + $0x68] sm:$0xff]
      %v321 = vld [vmem:[%s266 + $0x70] sm:$0xff]
      %v322 = vld [vmem:[%s266 + $0x78] sm:$0xff]
      %v323 = vld [vmem:[%s266 + $0x80] sm:$0xff]
      %v324 = vld [vmem:[%s266 + $0x88] sm:$0xff]
      %v325 = vld [vmem:[%s266 + $0x90] sm:$0xff]
      %v326 = vld [vmem:[%s266 + $0x98] sm:$0xff]
      %v327 = vld [vmem:[%s266 + $0xa0] sm:$0xff]
      %v328 = vld [vmem:[%s266 + $0xa8] sm:$0xff]
      %v329 = vld [vmem:[%s266 + $0xb0] sm:$0xff]
      %v330 = vld [vmem:[%s266 + $0xb8] sm:$0xff]
      %v331 = vld [vmem:[%s266 + $0xc0] sm:$0xff]
      %v332 = vld [vmem:[%s266 + $0xc8] sm:$0xff]
      %v333 = vld [vmem:[%s266 + $0xd0] sm:$0xff]
      %v334 = vld [vmem:[%s266 + $0xd8] sm:$0xff]
      %v335 = vld [vmem:[%s266 + $0xe0] sm:$0xff]
      %v336 = vld [vmem:[%s266 + $0xe8] sm:$0xff]
      %v337 = vld [vmem:[%s266 + $0xf0] sm:$0xff]
      %v338 = vld [vmem:[%s266 + $0xf8] sm:$0xff]
      %v339 = vld [vmem:[%s2] sm:$0x1]
      %v341 = vlaneseq
      %v342 = vshrl.u32 %v341, 7
      %v343 = vsub.s32 0, %v342
      %v344 = vrot.slane %v339, %v343
      %v346 = vsub.f32 %v307, %v344
      %v347 = vsub.f32 %v308, %v344
      %v348 = vsub.f32 %v309, %v344
      %v349 = vsub.f32 %v310, %v344
      %v350 = vsub.f32 %v311, %v344
      %v351 = vsub.f32 %v312, %v344
      %v352 = vsub.f32 %v313, %v344
      %v353 = vsub.f32 %v314, %v344
      %v354 = vsub.f32 %v315, %v344
      %v355 = vsub.f32 %v316, %v344
      %v356 = vsub.f32 %v317, %v344
      %v357 = vsub.f32 %v318, %v344
      %v358 = vsub.f32 %v319, %v344
      %v359 = vsub.f32 %v320, %v344
      %v360 = vsub.f32 %v321, %v344
      %v361 = vsub.f32 %v322, %v344
      %v362 = vsub.f32 %v323, %v344
      %v363 = vsub.f32 %v324, %v344
      %v364 = vsub.f32 %v325, %v344
      %v365 = vsub.f32 %v326, %v344
      %v366 = vsub.f32 %v327, %v344
      %v367 = vsub.f32 %v328, %v344
      %v368 = vsub.f32 %v329, %v344
      %v369 = vsub.f32 %v330, %v344
      %v370 = vsub.f32 %v331, %v344
      %v371 = vsub.f32 %v332, %v344
      %v372 = vsub.f32 %v333, %v344
      %v373 = vsub.f32 %v334, %v344
      %v374 = vsub.f32 %v335, %v344
      %v375 = vsub.f32 %v336, %v344
      %v376 = vsub.f32 %v337, %v344
      %v377 = vsub.f32 %v338, %v344
      %v378 = vld [vmem:[%s274] sm:$0xff]
      %v379 = vld [vmem:[%s274 + $0x8] sm:$0xff]
      %v380 = vld [vmem:[%s274 + $0x10] sm:$0xff]
      %v381 = vld [vmem:[%s274 + $0x18] sm:$0xff]
      %v382 = vld [vmem:[%s274 + $0x20] sm:$0xff]
      %v383 = vld [vmem:[%s274 + $0x28] sm:$0xff]
      %v384 = vld [vmem:[%s274 + $0x30] sm:$0xff]
      %v385 = vld [vmem:[%s274 + $0x38] sm:$0xff]
      %v386 = vld [vmem:[%s274 + $0x40] sm:$0xff]
      %v387 = vld [vmem:[%s274 + $0x48] sm:$0xff]
      %v388 = vld [vmem:[%s274 + $0x50] sm:$0xff]
      %v389 = vld [vmem:[%s274 + $0x58] sm:$0xff]
      %v390 = vld [vmem:[%s274 + $0x60] sm:$0xff]
      %v391 = vld [vmem:[%s274 + $0x68] sm:$0xff]
      %v392 = vld [vmem:[%s274 + $0x70] sm:$0xff]
      %v393 = vld [vmem:[%s274 + $0x78] sm:$0xff]
      %v394 = vld [vmem:[%s274 + $0x80] sm:$0xff]
      %v395 = vld [vmem:[%s274 + $0x88] sm:$0xff]
      %v396 = vld [vmem:[%s274 + $0x90] sm:$0xff]
      %v397 = vld [vmem:[%s274 + $0x98] sm:$0xff]
      %v398 = vld [vmem:[%s274 + $0xa0] sm:$0xff]
      %v399 = vld [vmem:[%s274 + $0xa8] sm:$0xff]
      %v400 = vld [vmem:[%s274 + $0xb0] sm:$0xff]
      %v401 = vld [vmem:[%s274 + $0xb8] sm:$0xff]
      %v402 = vld [vmem:[%s274 + $0xc0] sm:$0xff]
      %v403 = vld [vmem:[%s274 + $0xc8] sm:$0xff]
      %v404 = vld [vmem:[%s274 + $0xd0] sm:$0xff]
      %v405 = vld [vmem:[%s274 + $0xd8] sm:$0xff]
      %v406 = vld [vmem:[%s274 + $0xe0] sm:$0xff]
      %v407 = vld [vmem:[%s274 + $0xe8] sm:$0xff]
      %v408 = vld [vmem:[%s274 + $0xf0] sm:$0xff]
      %v409 = vld [vmem:[%s274 + $0xf8] sm:$0xff]
      %v410 = vld [vmem:[%s3] sm:$0x1]
      %v412 = vlaneseq
      %v413 = vshrl.u32 %v412, 7
      %v414 = vsub.s32 0, %v413
      %v415 = vrot.slane %v410, %v414
      %v417 = vsub.f32 %v378, %v415
      %v418 = vsub.f32 %v379, %v415
      %v419 = vsub.f32 %v380, %v415
      %v420 = vsub.f32 %v381, %v415
      %v421 = vsub.f32 %v382, %v415
      %v422 = vsub.f32 %v383, %v415
      %v423 = vsub.f32 %v384, %v415
      %v424 = vsub.f32 %v385, %v415
      %v425 = vsub.f32 %v386, %v415
      %v426 = vsub.f32 %v387, %v415
      %v427 = vsub.f32 %v388, %v415
      %v428 = vsub.f32 %v389, %v415
      %v429 = vsub.f32 %v390, %v415
      %v430 = vsub.f32 %v391, %v415
      %v431 = vsub.f32 %v392, %v415
      %v432 = vsub.f32 %v393, %v415
      %v433 = vsub.f32 %v394, %v415
      %v434 = vsub.f32 %v395, %v415
      %v435 = vsub.f32 %v396, %v415
      %v436 = vsub.f32 %v397, %v415
      %v437 = vsub.f32 %v398, %v415
      %v438 = vsub.f32 %v399, %v415
      %v439 = vsub.f32 %v400, %v415
      %v440 = vsub.f32 %v401, %v415
      %v441 = vsub.f32 %v402, %v415
      %v442 = vsub.f32 %v403, %v415
      %v443 = vsub.f32 %v404, %v415
      %v444 = vsub.f32 %v405, %v415
      %v445 = vsub.f32 %v406, %v415
      %v446 = vsub.f32 %v407, %v415
      %v447 = vsub.f32 %v408, %v415
      %v448 = vsub.f32 %v409, %v415
      %v449 = vld [vmem:[%s281] sm:$0xff]
      %v450 = vld [vmem:[%s281 + $0x8] sm:$0xff]
      %v451 = vld [vmem:[%s281 + $0x10] sm:$0xff]
      %v452 = vld [vmem:[%s281 + $0x18] sm:$0xff]
      %v453 = vld [vmem:[%s281 + $0x20] sm:$0xff]
      %v454 = vld [vmem:[%s281 + $0x28] sm:$0xff]
      %v455 = vld [vmem:[%s281 + $0x30] sm:$0xff]
      %v456 = vld [vmem:[%s281 + $0x38] sm:$0xff]
      %v457 = vld [vmem:[%s281 + $0x40] sm:$0xff]
      %v458 = vld [vmem:[%s281 + $0x48] sm:$0xff]
      %v459 = vld [vmem:[%s281 + $0x50] sm:$0xff]
      %v460 = vld [vmem:[%s281 + $0x58] sm:$0xff]
      %v461 = vld [vmem:[%s281 + $0x60] sm:$0xff]
      %v462 = vld [vmem:[%s281 + $0x68] sm:$0xff]
      %v463 = vld [vmem:[%s281 + $0x70] sm:$0xff]
      %v464 = vld [vmem:[%s281 + $0x78] sm:$0xff]
      %465 = vxpose.xlu0.b32.start [1/16] %v346, 128
      %466 = vxpose.xlu0.b32.cont [2/16] %v347, 128
      %467 = vxpose.xlu0.b32.cont [3/16] %v348, 128
      %468 = vxpose.xlu0.b32.cont [4/16] %v349, 128
      %469 = vxpose.xlu0.b32.cont [5/16] %v350, 128
      %470 = vxpose.xlu0.b32.cont [6/16] %v351, 128
      %471 = vxpose.xlu0.b32.cont [7/16] %v352, 128
      %472 = vxpose.xlu0.b32.cont [8/16] %v353, 128
      %473 = vxpose.xlu0.b32.cont [9/16] %v354, 128
      %474 = vxpose.xlu0.b32.cont [10/16] %v355, 128
      %475 = vxpose.xlu0.b32.cont [11/16] %v356, 128
      %476 = vxpose.xlu0.b32.cont [12/16] %v357, 128
      %477 = vxpose.xlu0.b32.cont [13/16] %v358, 128
      %478 = vxpose.xlu0.b32.cont [14/16] %v359, 128
      %479 = vxpose.xlu0.b32.cont [15/16] %v360, 128
      %480 = vxpose.xlu0.b32.end [16/16] %v361, 128
      %v481 = vpop.trf.xlu0
      %v482 = vpop.trf.xlu0
      %v483 = vpop.trf.xlu0
      %v484 = vpop.trf.xlu0
      %v485 = vpop.trf.xlu0
      %v486 = vpop.trf.xlu0
      %v487 = vpop.trf.xlu0
      %v488 = vpop.trf.xlu0
      %v489 = vpop.trf.xlu0
      %v490 = vpop.trf.xlu0
      %v491 = vpop.trf.xlu0
      %v492 = vpop.trf.xlu0
      %v493 = vpop.trf.xlu0
      %v494 = vpop.trf.xlu0
      %v495 = vpop.trf.xlu0
      %v496 = vpop.trf.xlu0
      %497 = vxpose.xlu0.b32.start [1/16] %v362, 128
      %498 = vxpose.xlu0.b32.cont [2/16] %v363, 128
      %499 = vxpose.xlu0.b32.cont [3/16] %v364, 128
      %500 = vxpose.xlu0.b32.cont [4/16] %v365, 128
      %501 = vxpose.xlu0.b32.cont [5/16] %v366, 128
      %502 = vxpose.xlu0.b32.cont [6/16] %v367, 128
      %503 = vxpose.xlu0.b32.cont [7/16] %v368, 128
      %504 = vxpose.xlu0.b32.cont [8/16] %v369, 128
      %505 = vxpose.xlu0.b32.cont [9/16] %v370, 128
      %506 = vxpose.xlu0.b32.cont [10/16] %v371, 128
      %507 = vxpose.xlu0.b32.cont [11/16] %v372, 128
      %508 = vxpose.xlu0.b32.cont [12/16] %v373, 128
      %509 = vxpose.xlu0.b32.cont [13/16] %v374, 128
      %510 = vxpose.xlu0.b32.cont [14/16] %v375, 128
      %511 = vxpose.xlu0.b32.cont [15/16] %v376, 128
      %512 = vxpose.xlu0.b32.end [16/16] %v377, 128
      %v513 = vpop.trf.xlu0
      %v514 = vpop.trf.xlu0
      %v515 = vpop.trf.xlu0
      %v516 = vpop.trf.xlu0
      %v517 = vpop.trf.xlu0
      %v518 = vpop.trf.xlu0
      %v519 = vpop.trf.xlu0
      %v520 = vpop.trf.xlu0
      %v521 = vpop.trf.xlu0
      %v522 = vpop.trf.xlu0
      %v523 = vpop.trf.xlu0
      %v524 = vpop.trf.xlu0
      %v525 = vpop.trf.xlu0
      %v526 = vpop.trf.xlu0
      %v527 = vpop.trf.xlu0
      %v528 = vpop.trf.xlu0
      %529 = vmatprep.subr.mxu0 0.0
      %530 = vmatpush1.msra.mxu0 %v432
      %531 = vmatprep.subr.mxu0 0.0
      %532 = vmatpush1.msra.mxu0 %v431
      %533 = vmatprep.subr.mxu0 0.0
      %534 = vmatpush1.msra.mxu0 %v430
      %535 = vmatprep.subr.mxu0 0.0
      %536 = vmatpush1.msra.mxu0 %v429
      %537 = vmatprep.subr.mxu0 0.0
      %538 = vmatpush1.msra.mxu0 %v428
      %539 = vmatprep.subr.mxu0 0.0
      %540 = vmatpush1.msra.mxu0 %v427
      %541 = vmatprep.subr.mxu0 0.0
      %542 = vmatpush1.msra.mxu0 %v426
      %543 = vmatprep.subr.mxu0 0.0
      %544 = vmatpush1.msra.mxu0 %v425
      %545 = vmatprep.subr.mxu0 0.0
      %546 = vmatpush1.msra.mxu0 %v424
      %547 = vmatprep.subr.mxu0 0.0
      %548 = vmatpush1.msra.mxu0 %v423
      %549 = vmatprep.subr.mxu0 0.0
      %550 = vmatpush1.msra.mxu0 %v422
      %551 = vmatprep.subr.mxu0 0.0
      %552 = vmatpush1.msra.mxu0 %v421
      %553 = vmatprep.subr.mxu0 0.0
      %554 = vmatpush1.msra.mxu0 %v420
      %555 = vmatprep.subr.mxu0 0.0
      %556 = vmatpush1.msra.mxu0 %v419
      %557 = vmatprep.subr.mxu0 0.0
      %558 = vmatpush1.msra.mxu0 %v418
      %559 = vmatprep.subr.mxu0 0.0
      %560 = vmatpush1.msra.mxu0 %v417
      %561 = vmatprep.subr.mxu0 0.0
      %562 = vmatpush2.msra.mxu0 %v448
      %563 = vmatprep.subr.mxu0 0.0
      %564 = vmatpush2.msra.mxu0 %v447
      %565 = vmatprep.subr.mxu0 0.0
      %566 = vmatpush2.msra.mxu0 %v446
      %567 = vmatprep.subr.mxu0 0.0
      %568 = vmatpush2.msra.mxu0 %v445
      %569 = vmatprep.subr.mxu0 0.0
      %570 = vmatpush2.msra.mxu0 %v444
      %571 = vmatprep.subr.mxu0 0.0
      %572 = vmatpush2.msra.mxu0 %v443
      %573 = vmatprep.subr.mxu0 0.0
      %574 = vmatpush2.msra.mxu0 %v442
      %575 = vmatprep.subr.mxu0 0.0
      %576 = vmatpush2.msra.mxu0 %v441
      %577 = vmatprep.subr.mxu0 0.0
      %578 = vmatpush2.msra.mxu0 %v440
      %579 = vmatprep.subr.mxu0 0.0
      %580 = vmatpush2.msra.mxu0 %v439
      %581 = vmatprep.subr.mxu0 0.0
      %582 = vmatpush2.msra.mxu0 %v438
      %583 = vmatprep.subr.mxu0 0.0
      %584 = vmatpush2.msra.mxu0 %v437
      %585 = vmatprep.subr.mxu0 0.0
      %586 = vmatpush2.msra.mxu0 %v436
      %587 = vmatprep.subr.mxu0 0.0
      %588 = vmatpush2.msra.mxu0 %v435
      %589 = vmatprep.subr.mxu0 0.0
      %590 = vmatpush2.msra.mxu0 %v434
      %591 = vmatprep.subr.mxu0 0.0
      %592 = vmatpush2.msra.mxu0 %v433
      %593 = vmatprep.mubr.f32.mxu0 %v513
      %594 = vmatmul.mubr.f32.gmra.mxu0 %v481
      %v595 = vpop.f32.mrf.mxu0
      %v596 = vadd.f32 0.0, %v595
      %v597 = vpop.f32.mrf.mxu0
      %598 = vmatprep.mubr.f32.mxu0 %v514
      %599 = vmatmul.mubr.f32.gmra.mxu0 %v482
      %v600 = vpop.f32.mrf.mxu0
      %v601 = vadd.f32 0.0, %v600
      %v602 = vpop.f32.mrf.mxu0
      %603 = vmatprep.mubr.f32.mxu0 %v515
      %604 = vmatmul.mubr.f32.gmra.mxu0 %v483
      %v605 = vpop.f32.mrf.mxu0
      %v606 = vadd.f32 0.0, %v605
      %v607 = vpop.f32.mrf.mxu0
      %608 = vmatprep.mubr.f32.mxu0 %v516
      %609 = vmatmul.mubr.f32.gmra.mxu0 %v484
      %v610 = vpop.f32.mrf.mxu0
      %v611 = vadd.f32 0.0, %v610
      %v612 = vpop.f32.mrf.mxu0
      %613 = vmatprep.mubr.f32.mxu0 %v517
      %614 = vmatmul.mubr.f32.gmra.mxu0 %v485
      %v615 = vpop.f32.mrf.mxu0
      %v616 = vadd.f32 0.0, %v615
      %v617 = vpop.f32.mrf.mxu0
      %618 = vmatprep.mubr.f32.mxu0 %v518
      %619 = vmatmul.mubr.f32.gmra.mxu0 %v486
      %v620 = vpop.f32.mrf.mxu0
      %v621 = vadd.f32 0.0, %v620
      %v622 = vpop.f32.mrf.mxu0
      %623 = vmatprep.mubr.f32.mxu0 %v519
      %624 = vmatmul.mubr.f32.gmra.mxu0 %v487
      %v625 = vpop.f32.mrf.mxu0
      %v626 = vadd.f32 0.0, %v625
      %v627 = vpop.f32.mrf.mxu0
      %628 = vmatprep.mubr.f32.mxu0 %v520
      %629 = vmatmul.mubr.f32.gmra.mxu0 %v488
      %v630 = vpop.f32.mrf.mxu0
      %v631 = vadd.f32 0.0, %v630
      %v632 = vpop.f32.mrf.mxu0
      %633 = vmatprep.mubr.f32.mxu0 %v521
      %634 = vmatmul.mubr.f32.gmra.mxu0 %v489
      %v635 = vpop.f32.mrf.mxu0
      %v636 = vadd.f32 0.0, %v635
      %v637 = vpop.f32.mrf.mxu0
      %638 = vmatprep.mubr.f32.mxu0 %v522
      %639 = vmatmul.mubr.f32.gmra.mxu0 %v490
      %v640 = vpop.f32.mrf.mxu0
      %v641 = vadd.f32 0.0, %v640
      %v642 = vpop.f32.mrf.mxu0
      %643 = vmatprep.mubr.f32.mxu0 %v523
      %644 = vmatmul.mubr.f32.gmra.mxu0 %v491
      %v645 = vpop.f32.mrf.mxu0
      %v646 = vadd.f32 0.0, %v645
      %v647 = vpop.f32.mrf.mxu0
      %648 = vmatprep.mubr.f32.mxu0 %v524
      %649 = vmatmul.mubr.f32.gmra.mxu0 %v492
      %v650 = vpop.f32.mrf.mxu0
      %v651 = vadd.f32 0.0, %v650
      %v652 = vpop.f32.mrf.mxu0
      %653 = vmatprep.mubr.f32.mxu0 %v525
      %654 = vmatmul.mubr.f32.gmra.mxu0 %v493
      %v655 = vpop.f32.mrf.mxu0
      %v656 = vadd.f32 0.0, %v655
      %v657 = vpop.f32.mrf.mxu0
      %658 = vmatprep.mubr.f32.mxu0 %v526
      %659 = vmatmul.mubr.f32.gmra.mxu0 %v494
      %v660 = vpop.f32.mrf.mxu0
      %v661 = vadd.f32 0.0, %v660
      %v662 = vpop.f32.mrf.mxu0
      %663 = vmatprep.mubr.f32.mxu0 %v527
      %664 = vmatmul.mubr.f32.gmra.mxu0 %v495
      %v665 = vpop.f32.mrf.mxu0
      %v666 = vadd.f32 0.0, %v665
      %v667 = vpop.f32.mrf.mxu0
      %668 = vmatprep.mubr.f32.mxu0 %v528
      %669 = vmatmul.mubr.f32.gmra.mxu0 %v496
      %v670 = vpop.f32.mrf.mxu0
      %v671 = vadd.f32 0.0, %v670
      %v672 = vpop.f32.mrf.mxu0
      %673 = vdwg.mxu0
      %v674 = vadd.f32 %v449, %v596
      %v675 = vadd.f32 %v450, %v601
      %v676 = vadd.f32 %v451, %v606
      %v677 = vadd.f32 %v452, %v611
      %v678 = vadd.f32 %v453, %v616
      %v679 = vadd.f32 %v454, %v621
      %v680 = vadd.f32 %v455, %v626
      %v681 = vadd.f32 %v456, %v631
      %v682 = vadd.f32 %v457, %v636
      %v683 = vadd.f32 %v458, %v641
      %v684 = vadd.f32 %v459, %v646
      %v685 = vadd.f32 %v460, %v651
      %v686 = vadd.f32 %v461, %v656
      %v687 = vadd.f32 %v462, %v661
      %v688 = vadd.f32 %v463, %v666
      %v689 = vadd.f32 %v464, %v671
      %690 = vst [vmem:[%s281] sm:$0xff] %v674
      %691 = vst [vmem:[%s281 + $0x8] sm:$0xff] %v675
      %692 = vst [vmem:[%s281 + $0x10] sm:$0xff] %v676
      %693 = vst [vmem:[%s281 + $0x18] sm:$0xff] %v677
      %694 = vst [vmem:[%s281 + $0x20] sm:$0xff] %v678
      %695 = vst [vmem:[%s281 + $0x28] sm:$0xff] %v679
      %696 = vst [vmem:[%s281 + $0x30] sm:$0xff] %v680
      %697 = vst [vmem:[%s281 + $0x38] sm:$0xff] %v681
      %698 = vst [vmem:[%s281 + $0x40] sm:$0xff] %v682
      %699 = vst [vmem:[%s281 + $0x48] sm:$0xff] %v683
      %700 = vst [vmem:[%s281 + $0x50] sm:$0xff] %v684
      %701 = vst [vmem:[%s281 + $0x58] sm:$0xff] %v685
      %702 = vst [vmem:[%s281 + $0x60] sm:$0xff] %v686
      %703 = vst [vmem:[%s281 + $0x68] sm:$0xff] %v687
      %704 = vst [vmem:[%s281 + $0x70] sm:$0xff] %v688
      %705 = vst [vmem:[%s281 + $0x78] sm:$0xff] %v689
      %v706 = vld [vmem:[%s285] sm:$0xf]
      %v707 = vadd.f32 %v346, %v347
      %v708 = vadd.f32 %v707, %v348
      %v709 = vadd.f32 %v708, %v349
      %v710 = vadd.f32 %v709, %v350
      %v711 = vadd.f32 %v710, %v351
      %v712 = vadd.f32 %v711, %v352
      %v713 = vadd.f32 %v712, %v353
      %v714 = vadd.f32 %v713, %v354
      %v715 = vadd.f32 %v714, %v355
      %v716 = vadd.f32 %v715, %v356
      %v717 = vadd.f32 %v716, %v357
      %v718 = vadd.f32 %v717, %v358
      %v719 = vadd.f32 %v718, %v359
      %v720 = vadd.f32 %v719, %v360
      %v721 = vadd.f32 %v720, %v361
      %v722 = vadd.f32 %v721, %v362
      %v723 = vadd.f32 %v722, %v363
      %v724 = vadd.f32 %v723, %v364
      %v725 = vadd.f32 %v724, %v365
      %v726 = vadd.f32 %v725, %v366
      %v727 = vadd.f32 %v726, %v367
      %v728 = vadd.f32 %v727, %v368
      %v729 = vadd.f32 %v728, %v369
      %v730 = vadd.f32 %v729, %v370
      %v731 = vadd.f32 %v730, %v371
      %v732 = vadd.f32 %v731, %v372
      %v733 = vadd.f32 %v732, %v373
      %v734 = vadd.f32 %v733, %v374
      %v735 = vadd.f32 %v734, %v375
      %v736 = vadd.f32 %v735, %v376
      %v737 = vadd.f32 %v736, %v377
      %v738 = vrot.slane %v737, 4
      %v739 = vadd.f32 %v737, %v738
      %v740 = vrot.slane %v739, 2
      %v741 = vadd.f32 %v739, %v740
      %v742 = vrot.slane %v741, 1
      %v743 = vadd.f32 %v741, %v742
      %v744 = vadd.f32 %v417, %v418
      %v745 = vadd.f32 %v744, %v419
      %v746 = vadd.f32 %v745, %v420
      %v747 = vadd.f32 %v746, %v421
      %v748 = vadd.f32 %v747, %v422
      %v749 = vadd.f32 %v748, %v423
      %v750 = vadd.f32 %v749, %v424
      %v751 = vadd.f32 %v750, %v425
      %v752 = vadd.f32 %v751, %v426
      %v753 = vadd.f32 %v752, %v427
      %v754 = vadd.f32 %v753, %v428
      %v755 = vadd.f32 %v754, %v429
      %v756 = vadd.f32 %v755, %v430
      %v757 = vadd.f32 %v756, %v431
      %v758 = vadd.f32 %v757, %v432
      %v759 = vadd.f32 %v758, %v433
      %v760 = vadd.f32 %v759, %v434
      %v761 = vadd.f32 %v760, %v435
      %v762 = vadd.f32 %v761, %v436
      %v763 = vadd.f32 %v762, %v437
      %v764 = vadd.f32 %v763, %v438
      %v765 = vadd.f32 %v764, %v439
      %v766 = vadd.f32 %v765, %v440
      %v767 = vadd.f32 %v766, %v441
      %v768 = vadd.f32 %v767, %v442
      %v769 = vadd.f32 %v768, %v443
      %v770 = vadd.f32 %v769, %v444
      %v771 = vadd.f32 %v770, %v445
      %v772 = vadd.f32 %v771, %v446
      %v773 = vadd.f32 %v772, %v447
      %v774 = vadd.f32 %v773, %v448
      %v775 = vrot.slane %v774, 4
      %v776 = vadd.f32 %v774, %v775
      %v777 = vrot.slane %v776, 2
      %v778 = vadd.f32 %v776, %v777
      %v779 = vrot.slane %v778, 1
      %v780 = vadd.f32 %v778, %v779
      %v781 = vmul.f32 %v346, %v346
      %v782 = vmul.f32 %v347, %v347
      %v783 = vmul.f32 %v348, %v348
      %v784 = vmul.f32 %v349, %v349
      %v785 = vmul.f32 %v350, %v350
      %v786 = vmul.f32 %v351, %v351
      %v787 = vmul.f32 %v352, %v352
      %v788 = vmul.f32 %v353, %v353
      %v789 = vmul.f32 %v354, %v354
      %v790 = vmul.f32 %v355, %v355
      %v791 = vmul.f32 %v356, %v356
      %v792 = vmul.f32 %v357, %v357
      %v793 = vmul.f32 %v358, %v358
      %v794 = vmul.f32 %v359, %v359
      %v795 = vmul.f32 %v360, %v360
      %v796 = vmul.f32 %v361, %v361
      %v797 = vmul.f32 %v362, %v362
      %v798 = vmul.f32 %v363, %v363
      %v799 = vmul.f32 %v364, %v364
      %v800 = vmul.f32 %v365, %v365
      %v801 = vmul.f32 %v366, %v366
      %v802 = vmul.f32 %v367, %v367
      %v803 = vmul.f32 %v368, %v368
      %v804 = vmul.f32 %v369, %v369
      %v805 = vmul.f32 %v370, %v370
      %v806 = vmul.f32 %v371, %v371
      %v807 = vmul.f32 %v372, %v372
      %v808 = vmul.f32 %v373, %v373
      %v809 = vmul.f32 %v374, %v374
      %v810 = vmul.f32 %v375, %v375
      %v811 = vmul.f32 %v376, %v376
      %v812 = vmul.f32 %v377, %v377
      %v813 = vadd.f32 %v781, %v782
      %v814 = vadd.f32 %v813, %v783
      %v815 = vadd.f32 %v814, %v784
      %v816 = vadd.f32 %v815, %v785
      %v817 = vadd.f32 %v816, %v786
      %v818 = vadd.f32 %v817, %v787
      %v819 = vadd.f32 %v818, %v788
      %v820 = vadd.f32 %v819, %v789
      %v821 = vadd.f32 %v820, %v790
      %v822 = vadd.f32 %v821, %v791
      %v823 = vadd.f32 %v822, %v792
      %v824 = vadd.f32 %v823, %v793
      %v825 = vadd.f32 %v824, %v794
      %v826 = vadd.f32 %v825, %v795
      %v827 = vadd.f32 %v826, %v796
      %v828 = vadd.f32 %v827, %v797
      %v829 = vadd.f32 %v828, %v798
      %v830 = vadd.f32 %v829, %v799
      %v831 = vadd.f32 %v830, %v800
      %v832 = vadd.f32 %v831, %v801
      %v833 = vadd.f32 %v832, %v802
      %v834 = vadd.f32 %v833, %v803
      %v835 = vadd.f32 %v834, %v804
      %v836 = vadd.f32 %v835, %v805
      %v837 = vadd.f32 %v836, %v806
      %v838 = vadd.f32 %v837, %v807
      %v839 = vadd.f32 %v838, %v808
      %v840 = vadd.f32 %v839, %v809
      %v841 = vadd.f32 %v840, %v810
      %v842 = vadd.f32 %v841, %v811
      %v843 = vadd.f32 %v842, %v812
      %v844 = vrot.slane %v843, 4
      %v845 = vadd.f32 %v843, %v844
      %v846 = vrot.slane %v845, 2
      %v847 = vadd.f32 %v845, %v846
      %v848 = vrot.slane %v847, 1
      %v849 = vadd.f32 %v847, %v848
      %v850 = vmul.f32 %v417, %v417
      %v851 = vmul.f32 %v418, %v418
      %v852 = vmul.f32 %v419, %v419
      %v853 = vmul.f32 %v420, %v420
      %v854 = vmul.f32 %v421, %v421
      %v855 = vmul.f32 %v422, %v422
      %v856 = vmul.f32 %v423, %v423
      %v857 = vmul.f32 %v424, %v424
      %v858 = vmul.f32 %v425, %v425
      %v859 = vmul.f32 %v426, %v426
      %v860 = vmul.f32 %v427, %v427
      %v861 = vmul.f32 %v428, %v428
      %v862 = vmul.f32 %v429, %v429
      %v863 = vmul.f32 %v430, %v430
      %v864 = vmul.f32 %v431, %v431
      %v865 = vmul.f32 %v432, %v432
      %v866 = vmul.f32 %v433, %v433
      %v867 = vmul.f32 %v434, %v434
      %v868 = vmul.f32 %v435, %v435
      %v869 = vmul.f32 %v436, %v436
      %v870 = vmul.f32 %v437, %v437
      %v871 = vmul.f32 %v438, %v438
      %v872 = vmul.f32 %v439, %v439
      %v873 = vmul.f32 %v440, %v440
      %v874 = vmul.f32 %v441, %v441
      %v875 = vmul.f32 %v442, %v442
      %v876 = vmul.f32 %v443, %v443
      %v877 = vmul.f32 %v444, %v444
      %v878 = vmul.f32 %v445, %v445
      %v879 = vmul.f32 %v446, %v446
      %v880 = vmul.f32 %v447, %v447
      %v881 = vmul.f32 %v448, %v448
      %v882 = vadd.f32 %v850, %v851
      %v883 = vadd.f32 %v882, %v852
      %v884 = vadd.f32 %v883, %v853
      %v885 = vadd.f32 %v884, %v854
      %v886 = vadd.f32 %v885, %v855
      %v887 = vadd.f32 %v886, %v856
      %v888 = vadd.f32 %v887, %v857
      %v889 = vadd.f32 %v888, %v858
      %v890 = vadd.f32 %v889, %v859
      %v891 = vadd.f32 %v890, %v860
      %v892 = vadd.f32 %v891, %v861
      %v893 = vadd.f32 %v892, %v862
      %v894 = vadd.f32 %v893, %v863
      %v895 = vadd.f32 %v894, %v864
      %v896 = vadd.f32 %v895, %v865
      %v897 = vadd.f32 %v896, %v866
      %v898 = vadd.f32 %v897, %v867
      %v899 = vadd.f32 %v898, %v868
      %v900 = vadd.f32 %v899, %v869
      %v901 = vadd.f32 %v900, %v870
      %v902 = vadd.f32 %v901, %v871
      %v903 = vadd.f32 %v902, %v872
      %v904 = vadd.f32 %v903, %v873
      %v905 = vadd.f32 %v904, %v874
      %v906 = vadd.f32 %v905, %v875
      %v907 = vadd.f32 %v906, %v876
      %v908 = vadd.f32 %v907, %v877
      %v909 = vadd.f32 %v908, %v878
      %v910 = vadd.f32 %v909, %v879
      %v911 = vadd.f32 %v910, %v880
      %v912 = vadd.f32 %v911, %v881
      %v913 = vrot.slane %v912, 4
      %v914 = vadd.f32 %v912, %v913
      %v915 = vrot.slane %v914, 2
      %v916 = vadd.f32 %v914, %v915
      %v917 = vrot.slane %v916, 1
      %v918 = vadd.f32 %v916, %v917
      %vm919 = vcmask 1040384
      %v920 = vsel %vm919, %v743, %v780
      %vm921 = vcmask 1041408
      %v922 = vsel %vm921, %v920, %v849
      %vm923 = vcmask 1042432
      %v924 = vsel %vm923, %v922, %v918
      %v925 = vadd.f32 %v706, %v924
      %926 = vst [vmem:[%s285] sm:$0xf] %v925
      %p927 = scmp.lt.s32.totalorder %s21, 1
      %s928 = scalar_select %p927, %s21, 1
      %s929 = smul.addr %s928, 16
      %s930 = smul.addr %s929, 8
      %s931 = scalar_lea.vmem %s4, %s930
      %p932 = scmp.lt.s32.totalorder %s21, 1
      %s933 = scalar_select %p932, %s21, 1
      %s934 = smul.addr %s933, 4
      %s935 = scalar_lea.vmem %s5, %s934
      // Predicated region
      $region41: #{_within_embed_contrast_impl.1} parent=35 // pred_check
        %p936 = pneg %p145
      $region42: #{_within_embed_contrast_impl.1} parent=35 // pred_check_branch
        %938 = sbr.rel (%p936) target = $region44
      $region43: #{_within_embed_contrast_impl.1} parent=35 // pred_region
        _
      $region44: #{_within_embed_contrast_impl.1} parent=35 // pred_fallthru
        _
      // Predicated region
      $region45: #{_within_embed_contrast_impl.1} parent=35 // pred_check
        %p939 = pneg %p171
      $region46: #{_within_embed_contrast_impl.1} parent=35 // pred_check_branch
        %941 = sbr.rel (%p939) target = $region48
      $region47: #{_within_embed_contrast_impl.1} parent=35 // pred_region
        _
      $region48: #{_within_embed_contrast_impl.1} parent=35 // pred_fallthru
        _
    $region36: #{_within_embed_contrast_impl.1} parent=5 // pred_fallthru
      _
    %p942 = scmp.le.s32.totalorder 2, %s12
    // Predicated region
    $region49: #{_within_embed_contrast_impl.1} parent=5 // pred_check
      %p943 = pneg %p942
    $region50: #{_within_embed_contrast_impl.1} parent=5 // pred_check_branch
      %945 = sbr.rel (%p943) target = $region52
    $region51: #{_within_embed_contrast_impl.1} parent=5 // pred_region
      %s946 = ssub.s32 %s12, 2
      // Predicated region
      $region53: #{_within_embed_contrast_impl.1} parent=51 // pred_check
        %p947 = pneg %p151
      $region54: #{_within_embed_contrast_impl.1} parent=51 // pred_check_branch
        %949 = sbr.rel (%p947) target = $region56
      $region55: #{_within_embed_contrast_impl.1} parent=51 // pred_region
        %p950 = scmp.lt.s32.totalorder %s23, 1
        %s951 = scalar_select %p950, %s23, 1
        %s952 = smul.addr %s951, 16
        %s953 = smul.addr %s952, 8
        %s954 = scalar_lea.vmem %s4, %s953
      $region56: #{_within_embed_contrast_impl.1} parent=51 // pred_fallthru
        _
      // Predicated region
      $region57: #{_within_embed_contrast_impl.1} parent=51 // pred_check
        %p955 = pneg %p177
      $region58: #{_within_embed_contrast_impl.1} parent=51 // pred_check_branch
        %957 = sbr.rel (%p955) target = $region60
      $region59: #{_within_embed_contrast_impl.1} parent=51 // pred_region
        %p958 = scmp.lt.s32.totalorder %s23, 1
        %s959 = scalar_select %p958, %s23, 1
        %s960 = smul.addr %s959, 4
        %s961 = scalar_lea.vmem %s5, %s960
      $region60: #{_within_embed_contrast_impl.1} parent=51 // pred_fallthru
        _
    $region52: #{_within_embed_contrast_impl.1} parent=5 // pred_fallthru
      _
  $region6: #{_within_embed_contrast_impl.1} parent=0 // loop_footer
    %s16 = sadd.s32 1, %s12
  $region7: #{_within_embed_contrast_impl.1} parent=0 // loop_footer_branch
    %11 = sbr.rel target = $region3
  $region8: #{_within_embed_contrast_impl.1} parent=0 // loop_exit
    _

</llo_original>
